<compile_context>
chip_gen: v5e
topology: v5e:2x2
jax: 0.10.0
libtpu: 0.0.40
codegen_flags: <defaults>
</compile_context>

<pallas_src>
import functools
import math

import jax
import jax.numpy as jnp
from jax.experimental import pallas as pl
from jax.experimental.pallas import tpu as pltpu


def _round_up(x, m):
    return ((x + m - 1) // m) * m


def _device_vmem_bytes():
    """Per-core VMEM capacity; conservative 64 MiB fallback (v7x-sized)."""
    try:
        info = pltpu.get_tpu_info()
        cap = int(getattr(info, "vmem_capacity_bytes", 0))
        if cap > 0:
            return cap
    except Exception:
        pass
    return 64 * 1024 * 1024


# ----------------------------- LayerNorm kernel -----------------------------
# Standalone LN (used by the generic `pre_norm` wrapper around arbitrary fn).

def _layernorm_kernel(x_ref, g_ref, b_ref, o_ref, *, eps):
    x = x_ref[...].astype(jnp.float32)                        # (tm, dim)
    mean = jnp.mean(x, axis=-1, keepdims=True)
    xc = x - mean
    var = jnp.mean(xc * xc, axis=-1, keepdims=True)           # two-pass var
    y = xc * jax.lax.rsqrt(var + eps)
    y = y * g_ref[...].astype(jnp.float32) + b_ref[...].astype(jnp.float32)
    o_ref[...] = y.astype(o_ref.dtype)


def layernorm_pallas(x2d, gamma, beta, *, eps=1e-5, rows_tile=1024,
                     out_dtype=None):
    """x2d: (N, dim) — LayerNorm over dim. Ragged N handled by grid masking."""
    n, dim = x2d.shape
    out_dtype = out_dtype or x2d.dtype
    x_bytes = jnp.dtype(x2d.dtype).itemsize
    o_bytes = jnp.dtype(out_dtype).itemsize

    vmem_cap = _device_vmem_bytes()
    budget = int(0.55 * vmem_cap)

    def footprint(tm):
        # double-buffered x tile + double-buffered out tile + gamma/beta
        return 2 * tm * dim * (x_bytes + o_bytes) + 4 * dim * 4

    tm = min(rows_tile, _round_up(n, 8))
    while tm > 8 and footprint(tm) > budget:
        tm //= 2
    tm = max(8, (tm // 8) * 8)
    if n >= 16:                               # keep >=2 row steps (v7x megacore)
        tm = min(tm, _round_up(pl.cdiv(n, 2), 8))
    grid_m = pl.cdiv(n, tm)

    vmem_limit = min(max(footprint(tm) + (8 << 20), 32 << 20),
                     int(0.9 * vmem_cap))

    g2d = gamma.reshape(1, dim)
    b2d = beta.reshape(1, dim)
    out = pl.pallas_call(
        functools.partial(_layernorm_kernel, eps=eps),
        out_shape=jax.ShapeDtypeStruct((n, dim), out_dtype),
        grid_spec=pltpu.PrefetchScalarGridSpec(
            num_scalar_prefetch=0,
            grid=(grid_m,),
            in_specs=[
                pl.BlockSpec((tm, dim), lambda i: (i, 0)),
                pl.BlockSpec((1, dim), lambda i: (0, 0)),
                pl.BlockSpec((1, dim), lambda i: (0, 0)),
            ],
            out_specs=pl.BlockSpec((tm, dim), lambda i: (i, 0)),
        ),
        compiler_params=pltpu.CompilerParams(
            dimension_semantics=("parallel",),
            vmem_limit_bytes=vmem_limit),
    )(x2d, g2d, b2d)
    return out


# -------------------- fused PreNorm(Linear) kernel ---------------------------
# LN the row tile in-register, cast to bf16, feed the MXU. The normalized
# tile is computed once per row block (at N-tile index 0), kept resident in a
# VMEM scratch, and reused for every N tile.

def _prenorm_linear_kernel(x_ref, g_ref, b_ref, w_ref, bias_ref, o_ref,
                           xn_ref, *, eps):
    @pl.when(pl.program_id(1) == 0)
    def _():
        x = x_ref[...].astype(jnp.float32)                    # (tm, dim)
        mean = jnp.mean(x, axis=-1, keepdims=True)
        xc = x - mean
        var = jnp.mean(xc * xc, axis=-1, keepdims=True)       # two-pass var
        y = xc * jax.lax.rsqrt(var + eps)
        y = y * g_ref[...].astype(jnp.float32) + b_ref[...].astype(jnp.float32)
        xn_ref[...] = y.astype(xn_ref.dtype)                  # bf16 for the MXU

    acc = jnp.dot(xn_ref[...], w_ref[...],                    # bf16 x bf16
                  preferred_element_type=jnp.float32)         # f32 accumulate
    o_ref[...] = (acc + bias_ref[...].astype(jnp.float32)).astype(o_ref.dtype)


def prepare_prenorm_linear_params(gamma, beta, w, bias, *, n_tile=256,
                                  weight_dtype=jnp.bfloat16):
    """One-time (model-load) prep: cast/pad the Linear weight & reshape params.

    Doing this here keeps the per-call wrapper free of weight-conversion HBM
    traffic.
    """
    dim, dim_out = w.shape
    if dim_out <= n_tile:
        tn, n_pad = dim_out, dim_out
    else:
        tn = n_tile
        n_pad = _round_up(dim_out, tn)
    w_p = w if n_pad == dim_out else jnp.pad(w, ((0, 0), (0, n_pad - dim_out)))
    bias_p = bias if n_pad == dim_out else jnp.pad(bias, ((0, n_pad - dim_out),))
    return dict(
        dim=dim, dim_out=dim_out, tn=tn, n_pad=n_pad,
        w=w_p.astype(weight_dtype),
        bias2d=bias_p.reshape(1, n_pad).astype(jnp.float32),
        gamma2d=gamma.reshape(1, dim),
        beta2d=beta.reshape(1, dim),
    )


def prenorm_linear_pallas(x, params, *, eps=1e-5, rows_tile=None,
                          out_dtype=None):
    """fn(LayerNorm(x)) where fn = Linear (prepared via
    prepare_prenorm_linear_params), fused into one kernel.

    x: (..., dim). Output dtype defaults to x.dtype; pass bf16 x / out_dtype
    to halve activation HBM traffic.
    """
    *lead, dim = x.shape
    assert dim == params["dim"]
    m = math.prod(lead) if lead else 1
    x2d = x.reshape(m, dim)

    dim_out = params["dim_out"]
    tn = params["tn"]
    n_pad = params["n_pad"]
    w = params["w"]
    out_dtype = out_dtype or x.dtype

    x_bytes = jnp.dtype(x.dtype).itemsize
    o_bytes = jnp.dtype(out_dtype).itemsize
    w_bytes = jnp.dtype(w.dtype).itemsize

    vmem_cap = _device_vmem_bytes()
    budget = int(0.55 * vmem_cap)

    def footprint(tm):
        return (2 * tm * dim * x_bytes        # x row tile (double-buffered)
                + tm * dim * 2                # bf16 xn scratch
                + 2 * dim * tn * w_bytes      # W column tile
                + 2 * tm * tn * o_bytes       # out tile
                + 2 * tn * 4 + 4 * dim * 4)   # bias + gamma/beta

    # Roofline-driven row tile: per j-step HBM traffic ~ W bytes, so
    # arithmetic intensity ~ tm MACs/byte; 512-1024 keeps v6e/v7x MXU-bound.
    if rows_tile is None:
        rows_tile = 1024
    tm = min(rows_tile, _round_up(m, 8))
    while tm > 8 and footprint(tm) > budget:
        tm //= 2
    tm = max(8, (tm // 8) * 8)
    if m >= 16:                               # >=2 row steps for v7x's 2 TCs
        tm = min(tm, _round_up(pl.cdiv(m, 2), 8))

    grid_m = pl.cdiv(m, tm)                   # ragged last block is masked
    grid_n = n_pad // tn

    vmem_limit = min(max(footprint(tm) + (8 << 20), 32 << 20),
                     int(0.9 * vmem_cap))

    # TODO(synk): on v7x at very large dim, the f32 x block could be DMA'd
    # manually (memory_space=pl.ANY) since it is only read at j == 0.

    out = pl.pallas_call(
        functools.partial(_prenorm_linear_kernel, eps=eps),
        out_shape=jax.ShapeDtypeStruct((m, dim_out), out_dtype),
        grid_spec=pltpu.PrefetchScalarGridSpec(
            num_scalar_prefetch=0,
            grid=(grid_m, grid_n),
            in_specs=[
                pl.BlockSpec((tm, dim), lambda i, j: (i, 0)),   # x rows
                pl.BlockSpec((1, dim), lambda i, j: (0, 0)),    # gamma
                pl.BlockSpec((1, dim), lambda i, j: (0, 0)),    # beta
                pl.BlockSpec((dim, tn), lambda i, j: (0, j)),   # W column tile
                pl.BlockSpec((1, tn), lambda i, j: (0, j)),     # bias tile
            ],
            out_specs=pl.BlockSpec((tm, tn), lambda i, j: (i, j)),
            scratch_shapes=[pltpu.VMEM((tm, dim), jnp.bfloat16)],
        ),
        compiler_params=pltpu.CompilerParams(
            # Row axis parallel (megacore); the N axis carries the LN scratch
            # computed at j == 0, so it stays "arbitrary".
            dimension_semantics=("parallel", "arbitrary"),
            vmem_limit_bytes=vmem_limit),
    )(x2d, params["gamma2d"], params["beta2d"], w, params["bias2d"])

    return out.reshape(*lead, dim_out)


# --------------------------------- PreNorm ----------------------------------

def pre_norm(x, gamma, beta, fn, **kwargs):
    """Generic PreNorm.forward: fn(LayerNorm(x), **kwargs) for arbitrary fn."""
    *lead, d = x.shape
    y2d = layernorm_pallas(x.reshape(-1, d), gamma, beta)
    return fn(y2d.reshape(*lead, d), **kwargs)


# ----------------------------------- main ------------------------------------

if __name__ == "__main__":
    # Small shapes, lane-dense feature dims (dim = dim_out = 128).
    batch, seq, dim, dim_out = 2, 16, 128, 128

    key = jax.random.PRNGKey(0)
    kx, kw, kb, kg, kbt = jax.random.split(key, 5)

    x = jax.random.normal(kx, (batch, seq, dim), dtype=jnp.float32)
    gamma = 1.0 + 0.1 * jax.random.normal(kg, (dim,), dtype=jnp.float32)
    beta = 0.05 * jax.random.normal(kbt, (dim,), dtype=jnp.float32)

    w = (jax.random.normal(kw, (dim, dim_out), dtype=jnp.float32)
         / jnp.sqrt(jnp.float32(dim)))
    b = 0.01 * jax.random.normal(kb, (dim_out,), dtype=jnp.float32)

    # One-time weight prep (model load time) — NOT in the hot path.
    lin_params = prepare_prenorm_linear_params(gamma, beta, w, b)
    lin_params = jax.tree_util.tree_map(
        lambda a: jax.block_until_ready(a) if isinstance(a, jax.Array) else a,
        lin_params)

    # Fused PreNorm(Linear) path (the hot path).
    out_fused = jax.block_until_ready(prenorm_linear_pallas(x, lin_params))

    # Generic PreNorm path (Pallas LN + arbitrary JAX fn).
    out_generic = jax.block_until_ready(
        pre_norm(x, gamma, beta, lambda y: jnp.einsum("bsd,de->bse", y, w) + b))

    # Pure-JAX f32 reference with PyTorch LayerNorm semantics.
    mean = jnp.mean(x, axis=-1, keepdims=True)
    var = jnp.mean((x - mean) ** 2, axis=-1, keepdims=True)
    xn = (x - mean) / jnp.sqrt(var + 1e-5)
    ln_ref = xn * gamma + beta
    ref = ln_ref @ w + b

    ln_out = layernorm_pallas(x.reshape(-1, dim), gamma, beta).reshape(x.shape)
    assert jnp.allclose(ln_out, ln_ref, atol=1e-4, rtol=1e-4), "LayerNorm mismatch"
    assert jnp.allclose(out_generic, ref, atol=1e-4, rtol=1e-4), "generic PreNorm mismatch"
    # Fused kernel uses bf16 MXU operands (f32 accumulation) -> looser tolerance.
    assert jnp.allclose(out_fused, ref, atol=5e-2, rtol=5e-2), "fused PreNorm mismatch"

    print("KERNEL_OK")
</pallas_src>

<mosaic_0001>
module attributes {stable_mosaic.version = 11 : i64} {
  func.func @_prenorm_linear_kernel(%arg0: i32, %arg1: i32, %arg2: memref<16x128xf32, #tpu.memory_space<vmem>>, %arg3: memref<1x128xf32, #tpu.memory_space<vmem>>, %arg4: memref<1x128xf32, #tpu.memory_space<vmem>>, %arg5: memref<128x128xbf16, #tpu.memory_space<vmem>>, %arg6: memref<1x128xf32, #tpu.memory_space<vmem>>, %arg7: memref<16x128xf32, #tpu.memory_space<vmem>>, %arg8: memref<16x128xbf16, #tpu.memory_space<vmem>>) attributes {dimension_semantics = [#tpu.dimension_semantics<parallel>, #tpu.dimension_semantics<arbitrary>], iteration_bounds = array<i64: 2, 1>, scalar_prefetch = 0 : i64, scratch_operands = 1 : i64, tpu.core_type = #tpu.core_type<tc>, window_params = [{transform_indices = @transform_0, window_bounds = array<i64: 16, 128>}, {pipeline_mode = #tpu.pipeline_mode<synchronous>, transform_indices = @transform_1, window_bounds = array<i64: 1, 128>}, {pipeline_mode = #tpu.pipeline_mode<synchronous>, transform_indices = @transform_2, window_bounds = array<i64: 1, 128>}, {transform_indices = @transform_3, window_bounds = array<i64: 128, 128>}, {transform_indices = @transform_4, window_bounds = array<i64: 1, 128>}, {transform_indices = @transform_5, window_bounds = array<i64: 16, 128>}]} {
    %c0_i32 = arith.constant 0 : i32
    %0 = arith.cmpi eq, %arg1, %c0_i32 : i32
    %1 = arith.extui %0 : i1 to i32
    %c0_i32_0 = arith.constant 0 : i32
    %2 = arith.cmpi ne, %1, %c0_i32_0 : i32
    scf.if %2 {
      %c0_8 = arith.constant 0 : index
      %c0_9 = arith.constant 0 : index
      %10 = vector.load %arg2[%c0_8, %c0_9] : memref<16x128xf32, #tpu.memory_space<vmem>>, vector<16x128xf32>
      %cst_10 = arith.constant dense<0.000000e+00> : vector<16xf32>
      %11 = vector.multi_reduction <add>, %10, %cst_10 [1] : vector<16x128xf32> to vector<16xf32>
      %12 = vector.shape_cast %11 : vector<16xf32> to vector<16x1xf32>
      %cst_11 = arith.constant 1.280000e+02 : f32
      %13 = vector.broadcast %cst_11 : f32 to vector<16x1xf32>
      %14 = arith.divf %12, %13 : vector<16x1xf32>
      %15 = vector.broadcast %14 : vector<16x1xf32> to vector<16x128xf32>
      %16 = arith.subf %10, %15 : vector<16x128xf32>
      %17 = arith.mulf %16, %16 : vector<16x128xf32>
      %cst_12 = arith.constant dense<0.000000e+00> : vector<16xf32>
      %18 = vector.multi_reduction <add>, %17, %cst_12 [1] : vector<16x128xf32> to vector<16xf32>
      %19 = vector.shape_cast %18 : vector<16xf32> to vector<16x1xf32>
      %cst_13 = arith.constant 1.280000e+02 : f32
      %20 = vector.broadcast %cst_13 : f32 to vector<16x1xf32>
      %21 = arith.divf %19, %20 : vector<16x1xf32>
      %cst_14 = arith.constant 9.99999974E-6 : f32
      %22 = vector.broadcast %cst_14 : f32 to vector<16x1xf32>
      %23 = arith.addf %21, %22 : vector<16x1xf32>
      %24 = math.rsqrt %23 : vector<16x1xf32>
      %25 = vector.broadcast %24 : vector<16x1xf32> to vector<16x128xf32>
      %26 = arith.mulf %16, %25 : vector<16x128xf32>
      %c0_15 = arith.constant 0 : index
      %c0_16 = arith.constant 0 : index
      %27 = vector.load %arg3[%c0_15, %c0_16] : memref<1x128xf32, #tpu.memory_space<vmem>>, vector<1x128xf32>
      %28 = vector.broadcast %27 : vector<1x128xf32> to vector<16x128xf32>
      %29 = arith.mulf %26, %28 : vector<16x128xf32>
      %c0_17 = arith.constant 0 : index
      %c0_18 = arith.constant 0 : index
      %30 = vector.load %arg4[%c0_17, %c0_18] : memref<1x128xf32, #tpu.memory_space<vmem>>, vector<1x128xf32>
      %31 = vector.broadcast %30 : vector<1x128xf32> to vector<16x128xf32>
      %32 = arith.addf %29, %31 : vector<16x128xf32>
      %33 = arith.truncf %32 : vector<16x128xf32> to vector<16x128xbf16>
      %c0_19 = arith.constant 0 : index
      %c0_20 = arith.constant 0 : index
      %34 = vector.load %arg8[%c0_19, %c0_20] : memref<16x128xbf16, #tpu.memory_space<vmem>>, vector<16x128xbf16>
      tpu.vector_store %arg8[%c0_19, %c0_20], %33 {strides = array<i32>} : memref<16x128xbf16, #tpu.memory_space<vmem>>, vector<16x128xbf16>,
    } else {
    }
    %c0 = arith.constant 0 : index
    %c0_1 = arith.constant 0 : index
    %3 = vector.load %arg8[%c0, %c0_1] : memref<16x128xbf16, #tpu.memory_space<vmem>>, vector<16x128xbf16>
    %c0_2 = arith.constant 0 : index
    %c0_3 = arith.constant 0 : index
    %4 = vector.load %arg5[%c0_2, %c0_3] : memref<128x128xbf16, #tpu.memory_space<vmem>>, vector<128x128xbf16>
    %cst = arith.constant dense<0.000000e+00> : vector<16x128xf32>
    %5 = tpu.matmul %3, %4, %cst {dimension_numbers = #tpu.dot_dimension_numbers<[1], [0], [0], [1], [0, 0, 1, 1], [], []>} : vector<16x128xbf16>, vector<128x128xbf16>, vector<16x128xf32> -> vector<16x128xf32>
    %c0_4 = arith.constant 0 : index
    %c0_5 = arith.constant 0 : index
    %6 = vector.load %arg6[%c0_4, %c0_5] : memref<1x128xf32, #tpu.memory_space<vmem>>, vector<1x128xf32>
    %7 = vector.broadcast %6 : vector<1x128xf32> to vector<16x128xf32>
    %8 = arith.addf %5, %7 : vector<16x128xf32>
    %c0_6 = arith.constant 0 : index
    %c0_7 = arith.constant 0 : index
    %9 = vector.load %arg7[%c0_6, %c0_7] : memref<16x128xf32, #tpu.memory_space<vmem>>, vector<16x128xf32>
    tpu.vector_store %arg7[%c0_6, %c0_7], %8 {strides = array<i32>} : memref<16x128xf32, #tpu.memory_space<vmem>>, vector<16x128xf32>,
    return
  }
  func.func @transform_0(%arg0: i32, %arg1: i32) -> (i32, i32) {
    %c0_i32 = arith.constant 0 : i32
    %c0_i32_0 = arith.constant 0 : i32
    return %arg0, %c0_i32 : i32, i32
  }
  func.func @transform_1(%arg0: i32, %arg1: i32) -> (i32, i32) {
    %c0_i32 = arith.constant 0 : i32
    %c0_i32_0 = arith.constant 0 : i32
    %c0_i32_1 = arith.constant 0 : i32
    return %c0_i32, %c0_i32_0 : i32, i32
  }
  func.func @transform_2(%arg0: i32, %arg1: i32) -> (i32, i32) {
    %c0_i32 = arith.constant 0 : i32
    %c0_i32_0 = arith.constant 0 : i32
    %c0_i32_1 = arith.constant 0 : i32
    return %c0_i32, %c0_i32_0 : i32, i32
  }
  func.func @transform_3(%arg0: i32, %arg1: i32) -> (i32, i32) {
    %c0_i32 = arith.constant 0 : i32
    %c0_i32_0 = arith.constant 0 : i32
    return %c0_i32, %arg1 : i32, i32
  }
  func.func @transform_4(%arg0: i32, %arg1: i32) -> (i32, i32) {
    %c0_i32 = arith.constant 0 : i32
    %c0_i32_0 = arith.constant 0 : i32
    return %c0_i32, %arg1 : i32, i32
  }
  func.func @transform_5(%arg0: i32, %arg1: i32) -> (i32, i32) {
    %c0_i32 = arith.constant 0 : i32
    return %arg0, %arg1 : i32, i32
  }
}

</mosaic_0001>

<llo_original>
// kernel: tpu_custom_call.1
$region0: #{tpu_custom_call.1}
  #allocation0 [shape = 'u32[]', space=smem, size = 0x4, offset = 0x4, fixed_abs, tag = 'smem constant byte address 0x4 - core index']
  #allocation1 [shape = 'u32[72,128]{1,0:T(1,128)}', space=vmem, size = 0x9000, scoped, tag = 'internal scratch']
  #allocation2 [shape = 'bf16[16,128]{1,0:T(8,128)(2,1)}', space=vmem, size = 0x1000, scoped, tag = 'scratch operand']
  %s0 = inlined_call_operand.hbm [shape: f32[32,128], index: 0, kind: input, shape index: {}]
  %s1 = inlined_call_operand.hbm [shape: f32[1,128], index: 1, kind: input, shape index: {}]
  %s2 = inlined_call_operand.vmem [shape: f32[1,128], index: 2, kind: input, shape index: {}]
  %s3 = inlined_call_operand.hbm [shape: bf16[128,128], index: 3, kind: input, shape index: {}]
  %s4 = inlined_call_operand.vmem [shape: f32[1,128], index: 4, kind: input, shape index: {}]
  %s5 = inlined_call_operand.hbm [shape: f32[32,128], index: 5, kind: output, shape index: {}]
  %s6 = sld [smem:[#allocation0]]
  $region69: #{tpu_custom_call.1} parent=0
    _
  %s8 = ssub.s32 1, %s6
  %s9 = scalar_select 0, %s8, %s6
  $region1: #{tpu_custom_call.1} parent=0
    #allocation3 [shape = 'u8[16384]{0}', space=vmem, size = 0x4000, scoped, tag = 'input window, operand 0']
    #allocation4 [shape = 's32[2]{0}', space=sflag, size = 0x8, scoped, tag = 'scoped memory for tpu_custom_call.1']
    #allocation5 [shape = 's32[2]{0}', space=sflag, size = 0x8, scoped, tag = 'scoped memory for tpu_custom_call.1']
    #allocation6 [shape = 'u8[512]{0}', space=vmem, size = 0x400, scoped, tag = 'input window, operand 1, single buffered']
    #allocation7 [shape = 's32[1]{0}', space=sflag, size = 0x4, scoped, tag = 'scoped memory for tpu_custom_call.1']
    #allocation8 [shape = 'u8[32768]{0}', space=vmem, size = 0x8000, scoped, tag = 'input window, operand 3, single buffered']
    #allocation9 [shape = 'u8[16384]{0}', space=vmem, size = 0x4000, scoped, tag = 'output window, operand 0']
    %10 = vsyncpa [#allocation4], 0
    %s11 = scalar_lea.sflag [#allocation4], 1
    %12 = vsyncpa %s11, 0
    %13 = vsyncpa [#allocation7], 0
    %14 = vsyncpa [#allocation5], 0
    %s15 = scalar_lea.sflag [#allocation5], 1
    %16 = vsyncpa %s15, 0
    loop: start=0, step=1, limit=4
    $region2: #{tpu_custom_call.1} parent=1 // loop_pre_header
      _
    $region3: #{tpu_custom_call.1} parent=1 // loop_header
      %s18 = sphi 0, %s22
      %p19 = scmp.ge.s32.totalorder %s18, 4
      %s25 = sphi 0, %s37
      %s26 = sphi 0, %s33
      %s27 = sphi 0, %s25
      %s28 = sphi 0, %s26
      %s29 = sphi 0, %s27
      %s30 = sphi 0, %s28
      %s40 = sphi 0, %s42
      %s43 = sphi 0, %s40
      %s44 = sphi 0, %s43
      %s60 = sphi 0, %s44
      %s64 = sphi 0, %s64
      %s66 = sphi 0, %s64
      %s67 = sphi 0, %s66
      %s81 = sphi 0, %s67
      %s85 = sphi 0, %s85
      %s87 = sphi 0, %s85
      %s88 = sphi 0, %s87
      %s102 = sphi 0, %s88
      %s108 = sphi 0, %s110
      %s111 = sphi 0, %s108
      %s112 = sphi 0, %s111
      %s128 = sphi 0, %s112
      %s134 = sphi 0, %s136
      %s137 = sphi 0, %s134
      %s138 = sphi 0, %s137
      %s154 = sphi 0, %s138
      %s162 = sphi 0, %s164
      %s165 = sphi 0, %s162
      %s166 = sphi 0, %s165
      %s182 = sphi 0, %s166
    $region4: #{tpu_custom_call.1} parent=1 // loop_header_branch
      %21 = sbr.rel (%p19) target = $region8
    $region5: #{tpu_custom_call.1} parent=1 // loop_body
      %s23 = ssub.s32 %s18, 1
      %s24 = ssub.s32 %s18, 2
      %s31 = sadd.s32 1, %s26
      %p32 = scmp.ge.s32.totalorder %s31, 1
      %s33 = scalar_select %p32, 0, %s31
      %s34 = sadd.s32 1, %s25
      %s35 = scalar_select %p32, %s34, %s25
      %p36 = scmp.ge.s32.totalorder %s35, 2
      %s37 = scalar_select %p36, 0, %s35
      %s38 = ssub.s32 %s25, %s37
      %p39 = scmp.eq.s32.totalorder %s38, 0
      %s41 = sadd.s32 %s40, 1
      %s42 = scalar_select %p39, %s40, %s41
      %p45 = pneg %p39
      %p46 = scmp.eq.s32.totalorder %s18, 1
      %p47 = por %p45, %p46
      %p48 = scmp.ne.s32.totalorder %s40, %s43
      %p49 = scmp.eq.s32.totalorder %s18, 0
      %p50 = por %p48, %p49
      %p51 = scmp.ne.s32.totalorder %s40, %s43
      %p52 = scmp.eq.s32.totalorder %s23, 1
      %p53 = por %p51, %p52
      %p54 = scmp.ne.s32.totalorder %s43, %s44
      %p55 = scmp.eq.s32.totalorder %s23, 0
      %p56 = por %p54, %p55
      %p57 = scmp.ne.s32.totalorder %s43, %s44
      %p58 = scmp.eq.s32.totalorder %s24, 1
      %p59 = por %p57, %p58
      %p61 = scmp.ne.s32.totalorder %s44, %s60
      %p62 = scmp.eq.s32.totalorder %s24, 0
      %p63 = por %p61, %p62
      %s65 = sadd.s32 %s64, 1
      %p68 = scmp.eq.s32.totalorder %s18, 1
      %p69 = scmp.ne.s32.totalorder %s64, %s66
      %p70 = scmp.eq.s32.totalorder %s18, 0
      %p71 = por %p69, %p70
      %p72 = scmp.ne.s32.totalorder %s64, %s66
      %p73 = scmp.eq.s32.totalorder %s23, 1
      %p74 = por %p72, %p73
      %p75 = scmp.ne.s32.totalorder %s66, %s67
      %p76 = scmp.eq.s32.totalorder %s23, 0
      %p77 = por %p75, %p76
      %p78 = scmp.ne.s32.totalorder %s66, %s67
      %p79 = scmp.eq.s32.totalorder %s24, 1
      %p80 = por %p78, %p79
      %p82 = scmp.ne.s32.totalorder %s67, %s81
      %p83 = scmp.eq.s32.totalorder %s24, 0
      %p84 = por %p82, %p83
      %s86 = sadd.s32 %s85, 1
      %p89 = scmp.eq.s32.totalorder %s18, 1
      %p90 = scmp.ne.s32.totalorder %s85, %s87
      %p91 = scmp.eq.s32.totalorder %s18, 0
      %p92 = por %p90, %p91
      %p93 = scmp.ne.s32.totalorder %s85, %s87
      %p94 = scmp.eq.s32.totalorder %s23, 1
      %p95 = por %p93, %p94
      %p96 = scmp.ne.s32.totalorder %s87, %s88
      %p97 = scmp.eq.s32.totalorder %s23, 0
      %p98 = por %p96, %p97
      %p99 = scmp.ne.s32.totalorder %s87, %s88
      %p100 = scmp.eq.s32.totalorder %s24, 1
      %p101 = por %p99, %p100
      %p103 = scmp.ne.s32.totalorder %s88, %s102
      %p104 = scmp.eq.s32.totalorder %s24, 0
      %p105 = por %p103, %p104
      %s106 = ssub.s32 %s26, %s33
      %p107 = scmp.eq.s32.totalorder %s106, 0
      %s109 = sadd.s32 %s108, 1
      %s110 = scalar_select %p107, %s108, %s109
      %p113 = pneg %p107
      %p114 = scmp.eq.s32.totalorder %s18, 1
      %p115 = por %p113, %p114
      %p116 = scmp.ne.s32.totalorder %s108, %s111
      %p117 = scmp.eq.s32.totalorder %s18, 0
      %p118 = por %p116, %p117
      %p119 = scmp.ne.s32.totalorder %s108, %s111
      %p120 = scmp.eq.s32.totalorder %s23, 1
      %p121 = por %p119, %p120
      %p122 = scmp.ne.s32.totalorder %s111, %s112
      %p123 = scmp.eq.s32.totalorder %s23, 0
      %p124 = por %p122, %p123
      %p125 = scmp.ne.s32.totalorder %s111, %s112
      %p126 = scmp.eq.s32.totalorder %s24, 1
      %p127 = por %p125, %p126
      %p129 = scmp.ne.s32.totalorder %s112, %s128
      %p130 = scmp.eq.s32.totalorder %s24, 0
      %p131 = por %p129, %p130
      %s132 = ssub.s32 %s26, %s33
      %p133 = scmp.eq.s32.totalorder %s132, 0
      %s135 = sadd.s32 %s134, 1
      %s136 = scalar_select %p133, %s134, %s135
      %p139 = pneg %p133
      %p140 = scmp.eq.s32.totalorder %s18, 1
      %p141 = por %p139, %p140
      %p142 = scmp.ne.s32.totalorder %s134, %s137
      %p143 = scmp.eq.s32.totalorder %s18, 0
      %p144 = por %p142, %p143
      %p145 = scmp.ne.s32.totalorder %s134, %s137
      %p146 = scmp.eq.s32.totalorder %s23, 1
      %p147 = por %p145, %p146
      %p148 = scmp.ne.s32.totalorder %s137, %s138
      %p149 = scmp.eq.s32.totalorder %s23, 0
      %p150 = por %p148, %p149
      %p151 = scmp.ne.s32.totalorder %s137, %s138
      %p152 = scmp.eq.s32.totalorder %s24, 1
      %p153 = por %p151, %p152
      %p155 = scmp.ne.s32.totalorder %s138, %s154
      %p156 = scmp.eq.s32.totalorder %s24, 0
      %p157 = por %p155, %p156
      %s158 = ssub.s32 %s25, %s37
      %s159 = ssub.s32 %s26, %s33
      %s160 = sor.u32 %s158, %s159
      %p161 = scmp.eq.s32.totalorder %s160, 0
      %s163 = sadd.s32 %s162, 1
      %s164 = scalar_select %p161, %s162, %s163
      %p167 = pneg %p161
      %p168 = scmp.eq.s32.totalorder %s18, 1
      %p169 = por %p167, %p168
      %p170 = scmp.ne.s32.totalorder %s162, %s165
      %p171 = scmp.eq.s32.totalorder %s18, 0
      %p172 = por %p170, %p171
      %p173 = scmp.ne.s32.totalorder %s162, %s165
      %p174 = scmp.eq.s32.totalorder %s23, 1
      %p175 = por %p173, %p174
      %p176 = scmp.ne.s32.totalorder %s165, %s166
      %p177 = scmp.eq.s32.totalorder %s23, 0
      %p178 = por %p176, %p177
      %p179 = scmp.ne.s32.totalorder %s165, %s166
      %p180 = scmp.eq.s32.totalorder %s24, 1
      %p181 = por %p179, %p180
      %p183 = scmp.ne.s32.totalorder %s166, %s182
      %p184 = scmp.eq.s32.totalorder %s24, 0
      %p185 = por %p183, %p184
      %p186 = scmp.le.s32.totalorder 1, %s18
      %p187 = scmp.lt.s32.totalorder %s18, 3
      %p188 = pnand %p186, %p187
      %p189 = pneg %p188
      // Predicated region
      $region9: #{tpu_custom_call.1} parent=5 // pred_check
        _
      $region10: #{tpu_custom_call.1} parent=5 // pred_check_branch
        %191 = sbr.rel (%p188) target = $region12
      $region11: #{tpu_custom_call.1} parent=5 // pred_region
        %s192 = ssub.s32 %s18, 1
        // Predicated region
        $region13: #{tpu_custom_call.1} parent=11 // pred_check
          %p193 = pneg %p77
        $region14: #{tpu_custom_call.1} parent=11 // pred_check_branch
          %195 = sbr.rel (%p193) target = $region16
        $region15: #{tpu_custom_call.1} parent=11 // pred_region
          %197 = vsyncadd [#allocation7], 0
          %s199 = sshll.u32 %s1, 4
          %s200 = int_to_ptr.hbm [resolvable:$true] %s199
          %s201 = sshll.u32 [#allocation6], 4
          %s202 = int_to_ptr.vmem [resolvable:$true] %s201
          %204 = dma.hbm_to_vmem [thread:$0]  %s200, 16, %s202, [#allocation7]
        $region16: #{tpu_custom_call.1} parent=11 // pred_fallthru
          _
        // Predicated region
        $region17: #{tpu_custom_call.1} parent=11 // pred_check
          %p205 = pneg %p98
        $region18: #{tpu_custom_call.1} parent=11 // pred_check_branch
          %207 = sbr.rel (%p205) target = $region20
        $region19: #{tpu_custom_call.1} parent=11 // pred_region
          _
        $region20: #{tpu_custom_call.1} parent=11 // pred_fallthru
          _
        // Predicated region
        $region21: #{tpu_custom_call.1} parent=11 // pred_check
          %p208 = pneg %p124
        $region22: #{tpu_custom_call.1} parent=11 // pred_check_branch
          %210 = sbr.rel (%p208) target = $region24
        $region23: #{tpu_custom_call.1} parent=11 // pred_region
          %212 = vsyncadd [#allocation7], 0
          %s213 = smul.addr %s28, 4
          %s214 = scalar_lea.hbm %s3, %s213
          %s215 = sshll.u32 %s214, 4
          %s216 = int_to_ptr.hbm [resolvable:$true] %s215
          %s217 = sshll.u32 [#allocation8], 4
          %s218 = int_to_ptr.vmem [resolvable:$true] %s217
          %223 = dma.hbm_to_vmem [thread:$0]  %s216, 1024, %s218, [#allocation7], 64, 64, 4
        $region24: #{tpu_custom_call.1} parent=11 // pred_fallthru
          _
        // Predicated region
        $region25: #{tpu_custom_call.1} parent=11 // pred_check
          %p224 = pneg %p150
        $region26: #{tpu_custom_call.1} parent=11 // pred_check_branch
          %226 = sbr.rel (%p224) target = $region28
        $region27: #{tpu_custom_call.1} parent=11 // pred_region
          %p227 = scmp.lt.s32.totalorder %s28, 0
          %s228 = scalar_select %p227, %s28, 0
          %s229 = scalar_lea.vmem %s4, %s228
        $region28: #{tpu_custom_call.1} parent=11 // pred_fallthru
          _
      $region12: #{tpu_custom_call.1} parent=5 // pred_fallthru
        _
      %p230 = scmp.lt.s32.totalorder %s18, 2
      // Predicated region
      $region29: #{tpu_custom_call.1} parent=5 // pred_check
        %p231 = pneg %p230
      $region30: #{tpu_custom_call.1} parent=5 // pred_check_branch
        %233 = sbr.rel (%p231) target = $region32
      $region31: #{tpu_custom_call.1} parent=5 // pred_region
        // Predicated region
        $region33: #{tpu_custom_call.1} parent=31 // pred_check
          %p234 = pneg %p50
        $region34: #{tpu_custom_call.1} parent=31 // pred_check_branch
          %236 = sbr.rel (%p234) target = $region36
        $region35: #{tpu_custom_call.1} parent=31 // pred_region
          %s237 = sand.u32 %s40, 1
          %s238 = scalar_lea.sflag [#allocation4], %s237
          %s239 = sand.u32 %s40, 1
          %s240 = smul.addr %s239, 16
          %s241 = scalar_lea.vmem [#allocation3], %s240
          %s242 = smul.u32 2, %s25
          %244 = vsyncadd %s238, 0
          %s245 = smul.addr %s242, 8
          %s246 = scalar_lea.hbm %s0, %s245
          %s247 = sshll.u32 %s246, 4
          %s248 = int_to_ptr.hbm [resolvable:$true] %s247
          %s249 = sshll.u32 %s241, 4
          %s250 = int_to_ptr.vmem [resolvable:$true] %s249
          %255 = dma.hbm_to_vmem [thread:$0]  %s248, 256, %s250, %s238, 128, 128, 8
        $region36: #{tpu_custom_call.1} parent=31 // pred_fallthru
          _
      $region32: #{tpu_custom_call.1} parent=5 // pred_fallthru
        _
      %p256 = scmp.le.s32.totalorder 1, %s18
      %p257 = scmp.lt.s32.totalorder %s18, 3
      %p258 = pnand %p256, %p257
      %p259 = pneg %p258
      // Predicated region
      $region37: #{tpu_custom_call.1} parent=5 // pred_check
        _
      $region38: #{tpu_custom_call.1} parent=5 // pred_check_branch
        %261 = sbr.rel (%p258) target = $region40
      $region39: #{tpu_custom_call.1} parent=5 // pred_region
        %s262 = ssub.s32 %s18, 1
        %s263 = sand.u32 %s43, 1
        %s264 = scalar_lea.sflag [#allocation4], %s263
        %s265 = sand.u32 %s43, 1
        %s266 = smul.addr %s265, 16
        %s267 = scalar_lea.vmem [#allocation3], %s266
        // Predicated region
        $region41: #{tpu_custom_call.1} parent=39 // pred_check
          %p268 = pneg %p56
        $region42: #{tpu_custom_call.1} parent=39 // pred_check_branch
          %270 = sbr.rel (%p268) target = $region44
        $region43: #{tpu_custom_call.1} parent=39 // pred_region
          %272 = dma.done %s264, 256
        $region44: #{tpu_custom_call.1} parent=39 // pred_fallthru
          _
        // Predicated region
        $region45: #{tpu_custom_call.1} parent=39 // pred_check
          %p273 = pneg %p77
        $region46: #{tpu_custom_call.1} parent=39 // pred_check_branch
          %275 = sbr.rel (%p273) target = $region48
        $region47: #{tpu_custom_call.1} parent=39 // pred_region
          %277 = dma.done [#allocation7], 16
        $region48: #{tpu_custom_call.1} parent=39 // pred_fallthru
          _
        // Predicated region
        $region49: #{tpu_custom_call.1} parent=39 // pred_check
          %p278 = pneg %p124
        $region50: #{tpu_custom_call.1} parent=39 // pred_check_branch
          %280 = sbr.rel (%p278) target = $region52
        $region51: #{tpu_custom_call.1} parent=39 // pred_region
          %282 = dma.done [#allocation7], 1024
        $region52: #{tpu_custom_call.1} parent=39 // pred_fallthru
          _
        %s283 = sand.u32 %s43, 1
        %s284 = scalar_lea.sflag [#allocation4], %s283
        %s285 = sand.u32 %s43, 1
        %s286 = smul.addr %s285, 16
        %s287 = scalar_lea.vmem [#allocation3], %s286
        %p288 = pneg %p56
        %p289 = pneg %p53
        %p290 = pneg %p77
        %p291 = pneg %p74
        %p292 = pneg %p98
        %p293 = pneg %p95
        %p294 = pneg %p124
        %p295 = pneg %p121
        %p296 = scmp.lt.s32.totalorder %s28, 0
        %s297 = scalar_select %p296, %s28, 0
        %s298 = scalar_lea.vmem %s4, %s297
        %p299 = pneg %p150
        %p300 = pneg %p147
        %p301 = pneg %p178
        %p302 = pneg %p175
        %s303 = sand.u32 %s165, 1
        %s304 = scalar_lea.sflag [#allocation5], %s303
        %s305 = sand.u32 %s165, 1
        %s306 = smul.addr %s305, 16
        %s307 = scalar_lea.vmem [#allocation9], %s306
        %s308 = smul.u32 2, %s27
        %p309 = scmp.lt.s32.totalorder %s28, 0
        %s310 = scalar_select %p309, %s28, 0
        %s311 = scalar_lea.vmem %s4, %s310
        %s312 = smul.u32 2, %s27
        %p313 = scmp.eq.s32.totalorder %s28, 0
        // Predicated region
        $region53: #{tpu_custom_call.1} parent=39 // pred_check
          %p314 = pneg %p313
        $region54: #{tpu_custom_call.1} parent=39 // pred_check_branch
          %316 = sbr.rel (%p314) target = $region56
        $region55: #{tpu_custom_call.1} parent=39 // pred_region
          %v317 = vld [vmem:[%s267] sm:$0xff]
          %v318 = vld [vmem:[%s267 + $0x8] sm:$0xff]
          %319 = vadd.xlane.f32.xlu0 %v317
          %v320 = vpop.xlane.xlu0 %319
          %321 = vadd.xlane.f32.xlu0 %v318
          %v322 = vpop.xlane.xlu0 %321
          %v323 = vrcp.pop 128.0
          %v324 = vmul.f32 128.0, %v323
          %v325 = vsub.f32 1.0, %v324
          %v326 = vmul.f32 %v323, %v325
          %v327 = vadd.f32 %v323, %v326
          %vm328 = vweird.f32 %v323
          %v329 = vsel %vm328, %v323, %v327
          %v330 = vmul.f32 %v320, %v329
          %v331 = vmul.f32 %v322, %v329
          %v332 = vsub.f32 %v317, %v330
          %v333 = vsub.f32 %v318, %v331
          %v334 = vmul.f32 %v332, %v332
          %v335 = vmul.f32 %v333, %v333
          %336 = vadd.xlane.f32.xlu0 %v334
          %v337 = vpop.xlane.xlu0 %336
          %338 = vadd.xlane.f32.xlu0 %v335
          %v339 = vpop.xlane.xlu0 %338
          %v340 = vmul.f32 %v337, %v329
          %v341 = vmul.f32 %v339, %v329
          %v342 = vadd.f32 %v340, 1e-05
          %v343 = vadd.f32 %v341, 1e-05
          %v344 = vrsqrt.pop %v342
          %v345 = vmul.f32 %v344, %v342
          %v346 = vmul.f32 %v345, %v344
          %v347 = vmul.f32 0.5, %v346
          %v348 = vsub.f32 1.5, %v347
          %v349 = vmul.f32 %v344, %v348
          %vm350 = vweird.f32 %v342
          %vm351 = vweird.f32 %v344
          %vm352 = vmor %vm350, %vm351
          %v353 = vsel %vm352, %v344, %v349
          %v354 = vrsqrt.pop %v343
          %v355 = vmul.f32 %v354, %v343
          %v356 = vmul.f32 %v355, %v354
          %v357 = vmul.f32 0.5, %v356
          %v358 = vsub.f32 1.5, %v357
          %v359 = vmul.f32 %v354, %v358
          %vm360 = vweird.f32 %v343
          %vm361 = vweird.f32 %v354
          %vm362 = vmor %vm360, %vm361
          %v363 = vsel %vm362, %v354, %v359
          %v364 = vmul.f32 %v332, %v353
          %v365 = vmul.f32 %v333, %v363
          %v366 = vld [vmem:[#allocation6] sm:$0x1]
          %v368 = vperm.slane %v366, 0
          %v370 = vmul.f32 %v364, %v368
          %v371 = vmul.f32 %v365, %v368
          %v372 = vld [vmem:[%s2] sm:$0x1]
          %v374 = vperm.slane %v372, 0
          %v376 = vadd.f32 %v370, %v374
          %v377 = vadd.f32 %v371, %v374
          %v378 = vpack.c.bf16 %v376, %v376
          %v379 = vpack.c.bf16 %v377, %v377
          %380 = vst [vmem:[#allocation2] sm:$0xf] %v378
          %381 = vst [vmem:[#allocation2 + $0x4] sm:$0xf] %v379
        $region56: #{tpu_custom_call.1} parent=39 // pred_fallthru
          _
        %v382 = vld [vmem:[#allocation2] sm:$0xf]
        %v383 = vld [vmem:[#allocation2 + $0x4] sm:$0xf]
        %v384 = vld [vmem:[#allocation8] sm:$0xf]
        %v385 = vld [vmem:[#allocation8 + $0x4] sm:$0xf]
        %v386 = vld [vmem:[#allocation8 + $0x8] sm:$0xf]
        %v387 = vld [vmem:[#allocation8 + $0xc] sm:$0xf]
        %v388 = vld [vmem:[#allocation8 + $0x10] sm:$0xf]
        %v389 = vld [vmem:[#allocation8 + $0x14] sm:$0xf]
        %v390 = vld [vmem:[#allocation8 + $0x18] sm:$0xf]
        %v391 = vld [vmem:[#allocation8 + $0x1c] sm:$0xf]
        %v392 = vld [vmem:[#allocation8 + $0x20] sm:$0xf]
        %v393 = vld [vmem:[#allocation8 + $0x24] sm:$0xf]
        %v394 = vld [vmem:[#allocation8 + $0x28] sm:$0xf]
        %v395 = vld [vmem:[#allocation8 + $0x2c] sm:$0xf]
        %v396 = vld [vmem:[#allocation8 + $0x30] sm:$0xf]
        %v397 = vld [vmem:[#allocation8 + $0x34] sm:$0xf]
        %v398 = vld [vmem:[#allocation8 + $0x38] sm:$0xf]
        %v399 = vld [vmem:[#allocation8 + $0x3c] sm:$0xf]
        %v400 = vld [vmem:[%s311] sm:$0x1]
        %v402 = vperm.slane %v400, 0
        %v406 = vunpack.c.l.b16 %v382
        %v407 = vunpack.c.l.b16 %v383
        %v408 = vpack.c.b16 %v407, %v406
        %v426 = vunpack.c.l.b16 %v384
        %v427 = vunpack.c.l.b16 %v385
        %v428 = vunpack.c.l.b16 %v386
        %v429 = vunpack.c.l.b16 %v387
        %v430 = vunpack.c.l.b16 %v388
        %v431 = vunpack.c.l.b16 %v389
        %v432 = vunpack.c.l.b16 %v390
        %v433 = vunpack.c.l.b16 %v391
        %v434 = vunpack.c.l.b16 %v392
        %v435 = vunpack.c.l.b16 %v393
        %v436 = vunpack.c.l.b16 %v394
        %v437 = vunpack.c.l.b16 %v395
        %v438 = vunpack.c.l.b16 %v396
        %v439 = vunpack.c.l.b16 %v397
        %v440 = vunpack.c.l.b16 %v398
        %v441 = vunpack.c.l.b16 %v399
        %v442 = vpack.c.b16 %v427, %v426
        %v443 = vpack.c.b16 %v429, %v428
        %v444 = vpack.c.b16 %v431, %v430
        %v445 = vpack.c.b16 %v433, %v432
        %v446 = vpack.c.b16 %v435, %v434
        %v447 = vpack.c.b16 %v437, %v436
        %v448 = vpack.c.b16 %v439, %v438
        %v449 = vpack.c.b16 %v441, %v440
        %458 = vmatpush.bf16.msra.mxu0 %v449
        %459 = vmatpush.bf16.msra.mxu0 %v448
        %460 = vmatpush.bf16.msra.mxu0 %v447
        %461 = vmatpush.bf16.msra.mxu0 %v446
        %462 = vmatpush.bf16.msra.mxu0 %v445
        %463 = vmatpush.bf16.msra.mxu0 %v444
        %464 = vmatpush.bf16.msra.mxu0 %v443
        %465 = vmatpush.bf16.msra.mxu0 %v442
        %466 = vmatmul.bf16.gmra.mxu0 %v408
        %v467 = vpop.f32.mrf.mxu0
        %v468 = vadd.f32 %v402, %v467
        %v469 = vpop.f32.mrf.mxu0
        %v470 = vadd.f32 %v402, %v469
        %471 = vdwg.mxu0
        %472 = vst [vmem:[%s307] sm:$0xff] %v468
        %473 = vst [vmem:[%s307 + $0x8] sm:$0xff] %v470
        %s474 = sand.u32 %s165, 1
        %s475 = scalar_lea.sflag [#allocation5], %s474
        %s476 = sand.u32 %s165, 1
        %s477 = smul.addr %s476, 16
        %s478 = scalar_lea.vmem [#allocation9], %s477
        // Predicated region
        $region57: #{tpu_custom_call.1} parent=39 // pred_check
          %p479 = pneg %p175
        $region58: #{tpu_custom_call.1} parent=39 // pred_check_branch
          %481 = sbr.rel (%p479) target = $region60
        $region59: #{tpu_custom_call.1} parent=39 // pred_region
          %s482 = smul.u32 2, %s27
          %484 = vsyncadd %s475, 0
          %s485 = sadd.s32 %s28, %s482
          %s486 = smul.addr %s485, 8
          %s487 = scalar_lea.hbm %s5, %s486
          %s488 = sshll.u32 %s478, 4
          %s489 = int_to_ptr.vmem [resolvable:$true] %s488
          %s490 = sshll.u32 %s487, 4
          %s491 = int_to_ptr.hbm [resolvable:$true] %s490
          %496 = dma.vmem_to_hbm [thread:$0]  %s489, 256, %s491, %s475, 128, 128, 8
        $region60: #{tpu_custom_call.1} parent=39 // pred_fallthru
          _
      $region40: #{tpu_custom_call.1} parent=5 // pred_fallthru
        _
      %p497 = scmp.le.s32.totalorder 2, %s18
      // Predicated region
      $region61: #{tpu_custom_call.1} parent=5 // pred_check
        %p498 = pneg %p497
      $region62: #{tpu_custom_call.1} parent=5 // pred_check_branch
        %500 = sbr.rel (%p498) target = $region64
      $region63: #{tpu_custom_call.1} parent=5 // pred_region
        %s501 = ssub.s32 %s18, 2
        // Predicated region
        $region65: #{tpu_custom_call.1} parent=63 // pred_check
          %p502 = pneg %p181
        $region66: #{tpu_custom_call.1} parent=63 // pred_check_branch
          %504 = sbr.rel (%p502) target = $region68
        $region67: #{tpu_custom_call.1} parent=63 // pred_region
          %s505 = sand.u32 %s166, 1
          %s506 = scalar_lea.sflag [#allocation5], %s505
          %s507 = sand.u32 %s166, 1
          %s508 = smul.addr %s507, 16
          %s509 = scalar_lea.vmem [#allocation9], %s508
          %511 = dma.done %s506, 256
        $region68: #{tpu_custom_call.1} parent=63 // pred_fallthru
          _
      $region64: #{tpu_custom_call.1} parent=5 // pred_fallthru
        _
    $region6: #{tpu_custom_call.1} parent=1 // loop_footer
      %s22 = sadd.s32 1, %s18
    $region7: #{tpu_custom_call.1} parent=1 // loop_footer_branch
      %17 = sbr.rel target = $region3
    $region8: #{tpu_custom_call.1} parent=1 // loop_exit
      _
    %512 = vsyncpa [#allocation4], 1
    %s513 = scalar_lea.sflag [#allocation4], 1
    %514 = vsyncpa %s513, 1
    %515 = vsyncpa [#allocation7], 1
    %516 = vsyncpa [#allocation5], 1
    %s517 = scalar_lea.sflag [#allocation5], 1
    %518 = vsyncpa %s517, 1

</llo_original>
